<compile_context>
chip_gen: v5e
topology: v5e:2x2
jax: 0.10.0
libtpu: 0.0.40
codegen_flags: <defaults>
</compile_context>

<pallas_src>
import jax
import jax.numpy as jnp
from jax.experimental import pallas as pl
from jax.experimental.pallas import tpu as pltpu


def _linear_hardsigmoid_kernel(xT_ref, w_ref, b_ref, o_ref):
    # xT_ref: (IN, TB)  VMEM, batch on lanes (lane-dense)
    # w_ref : (OUT, IN) VMEM, tiny, resident across grid steps
    # b_ref : (OUT, 1)  VMEM, tiny, resident across grid steps
    # o_ref : (OUT, TB) VMEM, batch on lanes (lane-dense)
    x = xT_ref[...]                                    # (IN, TB)
    w = w_ref[...]                                     # (OUT, IN)
    IN = x.shape[0]

    # Whole-tile accumulate: (OUT,1) * (1,TB) broadcast FMAs on the VPU.
    acc = w[:, 0:1] * x[0:1, :]                        # (OUT, TB)
    for k in range(1, IN):                             # static unroll (IN = 3)
        acc = acc + w[:, k:k + 1] * x[k:k + 1, :]
    acc = acc + b_ref[...]                             # (OUT, 1) lane-broadcast

    y = jnp.clip(acc + 3.0, 0.0, 6.0) * (1.0 / 6.0)    # hardsigmoid (multiply, not divide)
    o_ref[...] = y.astype(o_ref.dtype)                 # single unmasked store


def linear_hardsigmoid(x, w, b, *, tb=131072):
    """x: (B, IN) f32, w: (OUT, IN) f32, b: (OUT,) f32 -> (B, OUT) f32."""
    B, IN = x.shape
    OUT = w.shape[0]

    xT = jnp.asarray(x, jnp.float32).T                 # (IN, B): batch on lanes
    w2 = jnp.asarray(w, jnp.float32)                   # (OUT, IN)
    b2 = jnp.asarray(b, jnp.float32).reshape(OUT, 1)   # (OUT, 1)

    if B > tb:
        if tb % 128 != 0:
            raise ValueError(f"tb ({tb}) must be a multiple of 128 when B > tb")
        TB = tb
    else:
        TB = B                                         # single tiny block (e.g. demo B=2)

    grid = (pl.cdiv(B, TB),)                           # ragged last block handled by Pallas

    outT = pl.pallas_call(
        _linear_hardsigmoid_kernel,
        out_shape=jax.ShapeDtypeStruct((OUT, B), jnp.float32),
        grid=grid,
        in_specs=[
            pl.BlockSpec((IN, TB), lambda i: (0, i)),    # x^T streamed over batch
            pl.BlockSpec((OUT, IN), lambda i: (0, 0)),   # W: same block every step -> resident
            pl.BlockSpec((OUT, 1), lambda i: (0, 0)),    # b: same block every step -> resident
        ],
        out_specs=pl.BlockSpec((OUT, TB), lambda i: (0, i)),
        compiler_params=pltpu.CompilerParams(
            dimension_semantics=("parallel",),           # no cross-step carry; megacore-shardable
        ),
    )(xT, w2, b2)

    return outT.T                                        # back to (B, OUT)


def _reference(x, w, b):
    return jnp.clip(x @ w.T + b + 3.0, 0.0, 6.0) / 6.0


if __name__ == "__main__":
    key = jax.random.PRNGKey(0)
    kx, kw, kb, kx2 = jax.random.split(key, 4)

    B, IN, OUT = 2, 3, 6
    x1 = jax.random.normal(kx, (B, IN), dtype=jnp.float32)
    # Deterministic "Linear(3, 6)" parameters (synthetic init, not a checkpoint).
    bound = 1.0 / (IN ** 0.5)
    w = jax.random.uniform(kw, (OUT, IN), minval=-bound, maxval=bound, dtype=jnp.float32)
    b = jax.random.uniform(kb, (OUT,), minval=-bound, maxval=bound, dtype=jnp.float32)

    out = linear_hardsigmoid(x1, w, b)
    jax.block_until_ready(out)
    ref = _reference(x1, w, b)
    assert out.shape == ref.shape
    assert jnp.allclose(out, ref, atol=1e-5, rtol=1e-5), (out, ref)

    # Exercise the multi-step grid + ragged final block path (no jnp.pad).
    B2 = 300
    x2 = jax.random.normal(kx2, (B2, IN), dtype=jnp.float32)
    out2 = linear_hardsigmoid(x2, w, b, tb=256)
    jax.block_until_ready(out2)
    ref2 = _reference(x2, w, b)
    assert out2.shape == ref2.shape
    assert jnp.allclose(out2, ref2, atol=1e-5, rtol=1e-5)

    print("KERNEL_OK")
</pallas_src>

<mosaic_0001>
module attributes {stable_mosaic.version = 11 : i64} {
  func.func @_linear_hardsigmoid_kernel(%arg0: i32, %arg1: memref<3x2xf32, #tpu.memory_space<vmem>>, %arg2: memref<6x3xf32, #tpu.memory_space<vmem>>, %arg3: memref<6x1xf32, #tpu.memory_space<vmem>>, %arg4: memref<6x2xf32, #tpu.memory_space<vmem>>) attributes {dimension_semantics = [#tpu.dimension_semantics<parallel>], iteration_bounds = array<i64: 1>, scalar_prefetch = 0 : i64, scratch_operands = 0 : i64, tpu.core_type = #tpu.core_type<tc>, window_params = [{transform_indices = @transform_0, window_bounds = array<i64: 3, 2>}, {pipeline_mode = #tpu.pipeline_mode<synchronous>, transform_indices = @transform_1, window_bounds = array<i64: 6, 3>}, {pipeline_mode = #tpu.pipeline_mode<synchronous>, transform_indices = @transform_2, window_bounds = array<i64: 6, 1>}, {transform_indices = @transform_3, window_bounds = array<i64: 6, 2>}]} {
    %c0 = arith.constant 0 : index
    %c0_0 = arith.constant 0 : index
    %0 = vector.load %arg1[%c0, %c0_0] : memref<3x2xf32, #tpu.memory_space<vmem>>, vector<3x2xf32>
    %c0_1 = arith.constant 0 : index
    %c0_2 = arith.constant 0 : index
    %1 = vector.load %arg2[%c0_1, %c0_2] : memref<6x3xf32, #tpu.memory_space<vmem>>, vector<6x3xf32>
    %2 = vector.extract_strided_slice %1 {offsets = [0, 0], sizes = [6, 1], strides = [1, 1]} : vector<6x3xf32> to vector<6x1xf32>
    %3 = vector.extract_strided_slice %0 {offsets = [0, 0], sizes = [1, 2], strides = [1, 1]} : vector<3x2xf32> to vector<1x2xf32>
    %4 = vector.broadcast %2 : vector<6x1xf32> to vector<6x2xf32>
    %5 = vector.broadcast %3 : vector<1x2xf32> to vector<6x2xf32>
    %6 = arith.mulf %4, %5 : vector<6x2xf32>
    %7 = vector.extract_strided_slice %1 {offsets = [0, 1], sizes = [6, 1], strides = [1, 1]} : vector<6x3xf32> to vector<6x1xf32>
    %8 = vector.extract_strided_slice %0 {offsets = [1, 0], sizes = [1, 2], strides = [1, 1]} : vector<3x2xf32> to vector<1x2xf32>
    %9 = vector.broadcast %7 : vector<6x1xf32> to vector<6x2xf32>
    %10 = vector.broadcast %8 : vector<1x2xf32> to vector<6x2xf32>
    %11 = arith.mulf %9, %10 : vector<6x2xf32>
    %12 = arith.addf %6, %11 : vector<6x2xf32>
    %13 = vector.extract_strided_slice %1 {offsets = [0, 2], sizes = [6, 1], strides = [1, 1]} : vector<6x3xf32> to vector<6x1xf32>
    %14 = vector.extract_strided_slice %0 {offsets = [2, 0], sizes = [1, 2], strides = [1, 1]} : vector<3x2xf32> to vector<1x2xf32>
    %15 = vector.broadcast %13 : vector<6x1xf32> to vector<6x2xf32>
    %16 = vector.broadcast %14 : vector<1x2xf32> to vector<6x2xf32>
    %17 = arith.mulf %15, %16 : vector<6x2xf32>
    %18 = arith.addf %12, %17 : vector<6x2xf32>
    %c0_3 = arith.constant 0 : index
    %c0_4 = arith.constant 0 : index
    %19 = vector.load %arg3[%c0_3, %c0_4] : memref<6x1xf32, #tpu.memory_space<vmem>>, vector<6x1xf32>
    %20 = vector.broadcast %19 : vector<6x1xf32> to vector<6x2xf32>
    %21 = arith.addf %18, %20 : vector<6x2xf32>
    %cst = arith.constant 3.000000e+00 : f32
    %22 = vector.broadcast %cst : f32 to vector<6x2xf32>
    %23 = arith.addf %21, %22 : vector<6x2xf32>
    %cst_5 = arith.constant 0.000000e+00 : f32
    %cst_6 = arith.constant 6.000000e+00 : f32
    %24 = vector.broadcast %cst_5 : f32 to vector<6x2xf32>
    %25 = arith.maximumf %24, %23 : vector<6x2xf32>
    %26 = vector.broadcast %cst_6 : f32 to vector<6x2xf32>
    %27 = arith.minimumf %26, %25 : vector<6x2xf32>
    %cst_7 = arith.constant 0.166666672 : f32
    %28 = vector.broadcast %cst_7 : f32 to vector<6x2xf32>
    %29 = arith.mulf %27, %28 : vector<6x2xf32>
    %c0_8 = arith.constant 0 : index
    %c0_9 = arith.constant 0 : index
    %30 = vector.load %arg4[%c0_8, %c0_9] : memref<6x2xf32, #tpu.memory_space<vmem>>, vector<6x2xf32>
    tpu.vector_store %arg4[%c0_8, %c0_9], %29 {strides = array<i32>} : memref<6x2xf32, #tpu.memory_space<vmem>>, vector<6x2xf32>,
    return
  }
  func.func @transform_0(%arg0: i32) -> (i32, i32) {
    %c0_i32 = arith.constant 0 : i32
    %c0_i32_0 = arith.constant 0 : i32
    return %c0_i32, %arg0 : i32, i32
  }
  func.func @transform_1(%arg0: i32) -> (i32, i32) {
    %c0_i32 = arith.constant 0 : i32
    %c0_i32_0 = arith.constant 0 : i32
    %c0_i32_1 = arith.constant 0 : i32
    return %c0_i32, %c0_i32_0 : i32, i32
  }
  func.func @transform_2(%arg0: i32) -> (i32, i32) {
    %c0_i32 = arith.constant 0 : i32
    %c0_i32_0 = arith.constant 0 : i32
    %c0_i32_1 = arith.constant 0 : i32
    return %c0_i32, %c0_i32_0 : i32, i32
  }
  func.func @transform_3(%arg0: i32) -> (i32, i32) {
    %c0_i32 = arith.constant 0 : i32
    %c0_i32_0 = arith.constant 0 : i32
    return %c0_i32, %arg0 : i32, i32
  }
}

</mosaic_0001>

<llo_original>
// kernel: tpu_custom_call.1
$region0: #{tpu_custom_call.1}
  #allocation0 [shape = 'u32[]', space=smem, size = 0x4, offset = 0x4, fixed_abs, tag = 'smem constant byte address 0x4 - core index']
  #allocation1 [shape = 'u32[72,128]{1,0:T(1,128)}', space=vmem, size = 0x9000, scoped, tag = 'internal scratch']
  %s0 = inlined_call_operand.vmem [shape: f32[3,2], index: 0, kind: input, shape index: {}]
  %s1 = inlined_call_operand.vmem [shape: f32[6,3], index: 1, kind: input, shape index: {}]
  %s2 = inlined_call_operand.vmem [shape: f32[6,1], index: 2, kind: input, shape index: {}]
  %s3 = inlined_call_operand.vmem [shape: f32[6,2], index: 3, kind: output, shape index: {}]
  %s4 = sld [smem:[#allocation0]]
  $region22: #{tpu_custom_call.1} parent=0
    _
  %s6 = ssub.s32 1, %s4
  %s7 = scalar_select 0, %s6, %s4
  // Predicated region
  $region2: #{tpu_custom_call.1} parent=0 // pred_check
    _
  $region3: #{tpu_custom_call.1} parent=0 // pred_check_branch
    %9 = sbr.rel (0) target = $region5
  $region4: #{tpu_custom_call.1} parent=0 // pred_region
    _
  $region5: #{tpu_custom_call.1} parent=0 // pred_fallthru
    _
  // Predicated region
  $region6: #{tpu_custom_call.1} parent=0 // pred_check
    _
  $region7: #{tpu_custom_call.1} parent=0 // pred_check_branch
    %11 = sbr.rel (0) target = $region9
  $region8: #{tpu_custom_call.1} parent=0 // pred_region
    _
  $region9: #{tpu_custom_call.1} parent=0 // pred_fallthru
    _
  // Predicated region
  $region10: #{tpu_custom_call.1} parent=0 // pred_check
    _
  $region11: #{tpu_custom_call.1} parent=0 // pred_check_branch
    %13 = sbr.rel (0) target = $region13
  $region12: #{tpu_custom_call.1} parent=0 // pred_region
    _
  $region13: #{tpu_custom_call.1} parent=0 // pred_fallthru
    _
  %v14 = vld [vmem:[%s0] sm:$0x7]
  %v15 = vld [vmem:[%s1] sm:$0x3f]
  %17 = vset.pattern.permute.xlu0 0
  %18 = vperm.xlu0 %17, %v15
  %v19 = vpop.permute.xlu0 %18
  %v21 = vperm.slane %v14, 0
  %v22 = vmul.f32 %v19, %v21
  %23 = vset.pattern.permute.xlu0 1
  %24 = vperm.xlu0 %23, %v15
  %v25 = vpop.permute.xlu0 %24
  %v27 = vperm.slane %v14, 1
  %v28 = vmul.f32 %v25, %v27
  %v29 = vadd.f32 %v22, %v28
  %30 = vset.pattern.permute.xlu0 2
  %31 = vperm.xlu0 %30, %v15
  %v32 = vpop.permute.xlu0 %31
  %v34 = vperm.slane %v14, 2
  %v35 = vmul.f32 %v32, %v34
  %v36 = vadd.f32 %v29, %v35
  %v37 = vld [vmem:[%s2] sm:$0x3f]
  %39 = vset.pattern.permute.xlu0 0
  %40 = vperm.xlu0 %39, %v37
  %v41 = vpop.permute.xlu0 %40
  %v43 = vadd.f32 %v36, %v41
  %v44 = vadd.f32 %v43, 3.0
  %v45 = vmax.f32 %v44, 0.0
  %v46 = vmin.f32 %v45, 6.0
  %v47 = vmul.f32 %v46, 0.16666667
  %vm48 = vcmask 13312
  %49 = vst.msk [vmem:[%s3] sm:$0x3f] %vm48, %v47
  // Predicated region
  $region14: #{tpu_custom_call.1} parent=0 // pred_check
    _
  $region15: #{tpu_custom_call.1} parent=0 // pred_check_branch
    %51 = sbr.rel (0) target = $region17
  $region16: #{tpu_custom_call.1} parent=0 // pred_region
    _
  $region17: #{tpu_custom_call.1} parent=0 // pred_fallthru
    _
  // Predicated region
  $region18: #{tpu_custom_call.1} parent=0 // pred_check
    _
  $region19: #{tpu_custom_call.1} parent=0 // pred_check_branch
    %53 = sbr.rel (0) target = $region21
  $region20: #{tpu_custom_call.1} parent=0 // pred_region
    _
  $region21: #{tpu_custom_call.1} parent=0 // pred_fallthru
    _

</llo_original>
